<compile_context>
chip_gen: v5e
topology: v5e:2x2
jax: 0.10.0
libtpu: 0.0.40
codegen_flags: <defaults>
</compile_context>

<pallas_src>
import functools

import jax
import jax.numpy as jnp
from jax import lax
from jax.experimental import pallas as pl
from jax.experimental.pallas import tpu as pltpu


def _round_up(x, m):
    return (x + m - 1) // m * m


def _supcon_tile_kernel(zr_ref, zc_ref, labr_ref, labc_ref, out_ref,
                        rowsum_ref, possum_ref, poscnt_ref,
                        *, inv_temp, n_valid, n_padded, mm_dtype):
    i = pl.program_id(0)          # row tile
    j = pl.program_id(1)          # col tile (reduction axis, innermost)
    tm = zr_ref.shape[0]
    tn = zc_ref.shape[0]

    # -------- init per-row-tile accumulators (P3 pattern) --------
    @pl.when(j == 0)
    def _init():
        rowsum_ref[...] = jnp.zeros_like(rowsum_ref)
        possum_ref[...] = jnp.zeros_like(possum_ref)
        poscnt_ref[...] = jnp.zeros_like(poscnt_ref)

    # -------- critic: cosine similarity tile / temperature --------
    zr = zr_ref[...].astype(jnp.float32)
    zc = zc_ref[...].astype(jnp.float32)
    zr_n = zr * lax.rsqrt(jnp.maximum(jnp.sum(zr * zr, -1, keepdims=True), 1e-16))
    zc_n = zc * lax.rsqrt(jnp.maximum(jnp.sum(zc * zc, -1, keepdims=True), 1e-16))

    # MXU gram tile; bf16 operands when the input is bf16, f32 accumulation.
    s = lax.dot_general(zr_n.astype(mm_dtype), zc_n.astype(mm_dtype),
                        (((1,), (1,)), ((), ())),
                        preferred_element_type=jnp.float32) * inv_temp   # (tm, tn)

    # -------- diagonal / padding masks via small broadcast iotas --------
    row_ids = i * tm + lax.broadcasted_iota(jnp.int32, (tm, 1), 0)       # (tm, 1)
    col_ids = j * tn + lax.broadcasted_iota(jnp.int32, (1, tn), 1)       # (1, tn)
    valid = row_ids != col_ids                     # exclude self-similarity
    if n_padded > n_valid:                         # static: only if N was padded
        valid = jnp.logical_and(valid, col_ids < n_valid)

    # -------- online accumulation (exp + label compare in one tile pass) ----
    e = jnp.where(valid, jnp.exp(s), 0.0)
    rowsum_ref[...] += jnp.sum(e, axis=1, keepdims=True)

    pos = jnp.logical_and(labr_ref[...] == labc_ref[...], valid)         # (tm, tn)
    poscnt_ref[...] += jnp.sum(pos.astype(jnp.float32), axis=1, keepdims=True)
    possum_ref[...] += jnp.sum(jnp.where(pos, s, 0.0), axis=1, keepdims=True)

    # -------- finalize: per-row loss, written once per row tile --------
    @pl.when(j == pl.num_programs(1) - 1)
    def _finalize():
        # Finalize is O(N) total work, so the exact reciprocal costs nothing
        # measurable; approx=True is available if looser numerics are fine.
        inv_cnt = pl.reciprocal(poscnt_ref[...], approx=False)
        out_ref[...] = -possum_ref[...] * inv_cnt + jnp.log(rowsum_ref[...])


def supcon_loss(z, labels, *, temperature=0.5, num_positive=1, tile=256):
    """z: (num_positive*batch, D) float32/bf16; labels: (batch,) int."""
    n, d = z.shape
    batch_size = n // num_positive
    assert batch_size * num_positive == n

    # targets = torch.cat([labels] * num_positive)
    targets = jnp.concatenate([labels.astype(jnp.int32)] * num_positive)

    # Tile selection: single tile when N is small; otherwise a 128-multiple
    # tile (keeps all BlockSpecs legal and lane-dense).
    n8 = _round_up(n, 8)
    t = n8 if n8 <= tile else _round_up(tile, 128)
    n_pad = _round_up(n, t)
    d_pad = _round_up(d, 128)          # full MXU contraction depth

    z_p = jnp.pad(z, ((0, n_pad - n), (0, d_pad - d)))
    tgt_p = jnp.pad(targets, (0, n_pad - n), constant_values=-1)
    # Row labels kept as a (tile,1) sublane block (tiny: ~tile*0.5 KiB) to
    # avoid an in-kernel lane->sublane relayout; col labels are lane-dense.
    lab_row = tgt_p.reshape(n_pad, 1)
    lab_col = tgt_p.reshape(1, n_pad)

    gi = n_pad // t
    gj = n_pad // t

    mm_dtype = jnp.bfloat16 if z.dtype == jnp.bfloat16 else jnp.float32
    kernel = functools.partial(
        _supcon_tile_kernel,
        inv_temp=float(1.0 / temperature),
        n_valid=n, n_padded=n_pad, mm_dtype=mm_dtype)

    # VMEM budget from the tile arithmetic (double-buffered inputs + scratch +
    # f32 tile temporaries), capped below v7x's 64 MiB physical VMEM.
    itemsize = jnp.dtype(z.dtype).itemsize
    vmem_est = (2 * 2 * t * d_pad * itemsize        # two z tile streams, 2x buffered
                + 2 * (t * 128 * 4 + 8 * t * 4)     # label tiles (layout-padded)
                + 2 * t * 128 * 4                   # per-row-loss output tile
                + 3 * t * 128 * 4                   # accumulator scratch
                + 8 * t * t * 4)                    # in-kernel f32 temporaries headroom
    vmem_limit = int(min(48 * 2**20, max(16 * 2**20, 2 * vmem_est)))

    grid_spec = pltpu.PrefetchScalarGridSpec(
        num_scalar_prefetch=0,
        grid=(gi, gj),
        in_specs=[
            pl.BlockSpec((t, d_pad), lambda i, j: (i, 0)),   # z rows of this row tile
            pl.BlockSpec((t, d_pad), lambda i, j: (j, 0)),   # z rows of this col tile
            pl.BlockSpec((t, 1), lambda i, j: (i, 0)),       # row labels
            pl.BlockSpec((1, t), lambda i, j: (0, j)),       # col labels (lane-dense)
        ],
        out_specs=pl.BlockSpec((t, 1), lambda i, j: (i, 0)),
        scratch_shapes=[pltpu.VMEM((t, 1), jnp.float32)] * 3,
    )

    cost = pl.CostEstimate(
        flops=2 * n_pad * n_pad * d_pad + 8 * n_pad * n_pad,
        transcendentals=n_pad * n_pad + 2 * n_pad,
        bytes_accessed=(gi + gj) * n_pad * d_pad * itemsize + n_pad * 4,
    )

    per_row = pl.pallas_call(
        kernel,
        out_shape=jax.ShapeDtypeStruct((n_pad, 1), jnp.float32),
        grid_spec=grid_spec,
        compiler_params=pltpu.CompilerParams(
            dimension_semantics=("parallel", "arbitrary"),
            vmem_limit_bytes=vmem_limit),
        cost_estimate=cost,
    )(z_p, z_p, lab_row, lab_col)

    # Final mean over the real (unpadded) rows — tiny XLA reduction, safe under
    # megacore sharding of the row-tile axis.
    return jnp.mean(per_row[:n, 0])


def _reference_supcon(z, labels, *, temperature, num_positive):
    """Pure-JAX mirror of the PyTorch forward (for verification)."""
    n = z.shape[0]
    zn = z / jnp.linalg.norm(z, axis=-1, keepdims=True)
    sim = (zn @ zn.T) / temperature
    sim = jnp.where(jnp.eye(n, dtype=bool), -jnp.inf, sim)
    lse = jnp.log(jnp.sum(jnp.exp(sim), axis=1))
    targets = jnp.concatenate([labels] * num_positive)
    pos = (targets[:, None] == targets[None, :]) & (sim != -jnp.inf)
    pos_count = jnp.sum(pos, axis=1)
    pos_sims = jnp.sum(jnp.where(pos, sim, 0.0), axis=1)
    return jnp.mean(-pos_sims / pos_count + lse)


if __name__ == "__main__":
    key = jax.random.PRNGKey(0)
    kz, kl, kz2, kl2 = jax.random.split(key, 4)

    temperature = 0.5

    # ---- Test 1: small single-tile case (module-scale shapes) ----
    batch_size, num_positive, feature_dim = 8, 2, 32
    n = batch_size * num_positive
    z = jax.random.normal(kz, (n, feature_dim), dtype=jnp.float32)
    labels = jax.random.randint(kl, (batch_size,), 0, 4, dtype=jnp.int32)

    loss = supcon_loss(z, labels, temperature=temperature,
                       num_positive=num_positive)
    loss = jax.block_until_ready(loss)
    if bool(jnp.isnan(loss)):
        raise ValueError("supcon_loss is nan!")
    ref = _reference_supcon(z, labels, temperature=temperature,
                            num_positive=num_positive)
    assert jnp.allclose(loss, ref, rtol=1e-5, atol=1e-5), (loss, ref)

    # ---- Test 2: multi-tile grid with row/col padding (exercises online
    #      accumulation, cross-tile diagonal handling, padded-column mask) ----
    batch2, num_pos2 = 70, 2
    n2 = batch2 * num_pos2                      # 140 -> padded to 256 (tile=128)
    z2 = jax.random.normal(kz2, (n2, feature_dim), dtype=jnp.float32)
    labels2 = jax.random.randint(kl2, (batch2,), 0, 10, dtype=jnp.int32)
    loss2 = jax.block_until_ready(
        supcon_loss(z2, labels2, temperature=temperature,
                    num_positive=num_pos2, tile=128))
    ref2 = _reference_supcon(z2, labels2, temperature=temperature,
                             num_positive=num_pos2)
    assert jnp.allclose(loss2, ref2, rtol=1e-4, atol=1e-4), (loss2, ref2)

    # ---- Test 3: bf16 inputs drive the MXU in bf16 (looser tolerance) ----
    loss_bf16 = jax.block_until_ready(
        supcon_loss(z.astype(jnp.bfloat16), labels, temperature=temperature,
                    num_positive=num_positive))
    assert bool(jnp.isfinite(loss_bf16))
    assert jnp.allclose(loss_bf16, ref, rtol=5e-2, atol=5e-2), (loss_bf16, ref)

    print("KERNEL_OK")
</pallas_src>

<mosaic_0001>
module attributes {stable_mosaic.version = 11 : i64} {
  func.func @_supcon_tile_kernel(%arg0: i32, %arg1: i32, %arg2: memref<16x128xf32, #tpu.memory_space<vmem>>, %arg3: memref<16x128xf32, #tpu.memory_space<vmem>>, %arg4: memref<16x1xi32, #tpu.memory_space<vmem>>, %arg5: memref<1x16xi32, #tpu.memory_space<vmem>>, %arg6: memref<16x1xf32, #tpu.memory_space<vmem>>, %arg7: memref<16x1xf32, #tpu.memory_space<vmem>>, %arg8: memref<16x1xf32, #tpu.memory_space<vmem>>, %arg9: memref<16x1xf32, #tpu.memory_space<vmem>>) attributes {dimension_semantics = [#tpu.dimension_semantics<parallel>, #tpu.dimension_semantics<arbitrary>], iteration_bounds = array<i64: 1, 1>, scalar_prefetch = 0 : i64, scratch_operands = 3 : i64, tpu.core_type = #tpu.core_type<tc>, window_params = [{transform_indices = @transform_0, window_bounds = array<i64: 16, 128>}, {transform_indices = @transform_1, window_bounds = array<i64: 16, 128>}, {transform_indices = @transform_2, window_bounds = array<i64: 16, 1>}, {transform_indices = @transform_3, window_bounds = array<i64: 1, 16>}, {transform_indices = @transform_4, window_bounds = array<i64: 16, 1>}]} {
    %c0_i32 = arith.constant 0 : i32
    %0 = arith.cmpi eq, %arg1, %c0_i32 : i32
    %1 = arith.extui %0 : i1 to i32
    %c0_i32_0 = arith.constant 0 : i32
    %2 = arith.cmpi ne, %1, %c0_i32_0 : i32
    scf.if %2 {
      %cst_33 = arith.constant 0.000000e+00 : f32
      %66 = vector.broadcast %cst_33 : f32 to vector<16x1xf32>
      %c0_34 = arith.constant 0 : index
      %c0_35 = arith.constant 0 : index
      %67 = vector.load %arg7[%c0_34, %c0_35] : memref<16x1xf32, #tpu.memory_space<vmem>>, vector<16x1xf32>
      tpu.vector_store %arg7[%c0_34, %c0_35], %66 {strides = array<i32>} : memref<16x1xf32, #tpu.memory_space<vmem>>, vector<16x1xf32>,
      %cst_36 = arith.constant 0.000000e+00 : f32
      %68 = vector.broadcast %cst_36 : f32 to vector<16x1xf32>
      %c0_37 = arith.constant 0 : index
      %c0_38 = arith.constant 0 : index
      %69 = vector.load %arg8[%c0_37, %c0_38] : memref<16x1xf32, #tpu.memory_space<vmem>>, vector<16x1xf32>
      tpu.vector_store %arg8[%c0_37, %c0_38], %68 {strides = array<i32>} : memref<16x1xf32, #tpu.memory_space<vmem>>, vector<16x1xf32>,
      %cst_39 = arith.constant 0.000000e+00 : f32
      %70 = vector.broadcast %cst_39 : f32 to vector<16x1xf32>
      %c0_40 = arith.constant 0 : index
      %c0_41 = arith.constant 0 : index
      %71 = vector.load %arg9[%c0_40, %c0_41] : memref<16x1xf32, #tpu.memory_space<vmem>>, vector<16x1xf32>
      tpu.vector_store %arg9[%c0_40, %c0_41], %70 {strides = array<i32>} : memref<16x1xf32, #tpu.memory_space<vmem>>, vector<16x1xf32>,
    } else {
    }
    %c0 = arith.constant 0 : index
    %c0_1 = arith.constant 0 : index
    %3 = vector.load %arg2[%c0, %c0_1] : memref<16x128xf32, #tpu.memory_space<vmem>>, vector<16x128xf32>
    %c0_2 = arith.constant 0 : index
    %c0_3 = arith.constant 0 : index
    %4 = vector.load %arg3[%c0_2, %c0_3] : memref<16x128xf32, #tpu.memory_space<vmem>>, vector<16x128xf32>
    %5 = arith.mulf %3, %3 : vector<16x128xf32>
    %cst = arith.constant dense<0.000000e+00> : vector<16xf32>
    %6 = vector.multi_reduction <add>, %5, %cst [1] : vector<16x128xf32> to vector<16xf32>
    %7 = vector.shape_cast %6 : vector<16xf32> to vector<16x1xf32>
    %cst_4 = arith.constant 1.000000e-16 : f32
    %8 = vector.broadcast %cst_4 : f32 to vector<16x1xf32>
    %9 = arith.maximumf %7, %8 : vector<16x1xf32>
    %10 = math.rsqrt %9 : vector<16x1xf32>
    %11 = vector.broadcast %10 : vector<16x1xf32> to vector<16x128xf32>
    %12 = arith.mulf %3, %11 : vector<16x128xf32>
    %13 = arith.mulf %4, %4 : vector<16x128xf32>
    %cst_5 = arith.constant dense<0.000000e+00> : vector<16xf32>
    %14 = vector.multi_reduction <add>, %13, %cst_5 [1] : vector<16x128xf32> to vector<16xf32>
    %15 = vector.shape_cast %14 : vector<16xf32> to vector<16x1xf32>
    %cst_6 = arith.constant 1.000000e-16 : f32
    %16 = vector.broadcast %cst_6 : f32 to vector<16x1xf32>
    %17 = arith.maximumf %15, %16 : vector<16x1xf32>
    %18 = math.rsqrt %17 : vector<16x1xf32>
    %19 = vector.broadcast %18 : vector<16x1xf32> to vector<16x128xf32>
    %20 = arith.mulf %4, %19 : vector<16x128xf32>
    %cst_7 = arith.constant dense<0.000000e+00> : vector<16x16xf32>
    %21 = tpu.matmul %12, %20, %cst_7 {dimension_numbers = #tpu.dot_dimension_numbers<[1], [1], [0], [0], [0, 0, 1, 0], [], []>} : vector<16x128xf32>, vector<16x128xf32>, vector<16x16xf32> -> vector<16x16xf32>
    %cst_8 = arith.constant 2.000000e+00 : f32
    %22 = vector.broadcast %cst_8 : f32 to vector<16x16xf32>
    %23 = arith.mulf %21, %22 : vector<16x16xf32>
    %c16_i32 = arith.constant 16 : i32
    %24 = arith.muli %arg0, %c16_i32 : i32
    %25 = tpu.iota {dimensions = array<i32: 0>} : vector<16x1xi32>
    %26 = vector.broadcast %24 : i32 to vector<16x1xi32>
    %27 = arith.addi %26, %25 : vector<16x1xi32>
    %c16_i32_9 = arith.constant 16 : i32
    %28 = arith.muli %arg1, %c16_i32_9 : i32
    %29 = tpu.iota {dimensions = array<i32: 1>} : vector<1x16xi32>
    %30 = vector.broadcast %28 : i32 to vector<1x16xi32>
    %31 = arith.addi %30, %29 : vector<1x16xi32>
    %32 = vector.broadcast %27 : vector<16x1xi32> to vector<16x16xi32>
    %33 = vector.broadcast %31 : vector<1x16xi32> to vector<16x16xi32>
    %34 = arith.cmpi ne, %32, %33 : vector<16x16xi32>
    %35 = math.exp %23 : vector<16x16xf32>
    %cst_10 = arith.constant 0.000000e+00 : f32
    %36 = vector.broadcast %cst_10 : f32 to vector<16x16xf32>
    %37 = arith.select %34, %35, %36 : vector<16x16xi1>, vector<16x16xf32>
    %c0_11 = arith.constant 0 : index
    %c0_12 = arith.constant 0 : index
    %38 = vector.load %arg7[%c0_11, %c0_12] : memref<16x1xf32, #tpu.memory_space<vmem>>, vector<16x1xf32>
    %cst_13 = arith.constant dense<0.000000e+00> : vector<16xf32>
    %39 = vector.multi_reduction <add>, %37, %cst_13 [1] : vector<16x16xf32> to vector<16xf32>
    %40 = vector.shape_cast %39 : vector<16xf32> to vector<16x1xf32>
    %41 = arith.addf %38, %40 : vector<16x1xf32>
    %c0_14 = arith.constant 0 : index
    %c0_15 = arith.constant 0 : index
    %42 = vector.load %arg7[%c0_14, %c0_15] : memref<16x1xf32, #tpu.memory_space<vmem>>, vector<16x1xf32>
    tpu.vector_store %arg7[%c0_14, %c0_15], %41 {strides = array<i32>} : memref<16x1xf32, #tpu.memory_space<vmem>>, vector<16x1xf32>,
    %c0_16 = arith.constant 0 : index
    %c0_17 = arith.constant 0 : index
    %43 = vector.load %arg4[%c0_16, %c0_17] : memref<16x1xi32, #tpu.memory_space<vmem>>, vector<16x1xi32>
    %c0_18 = arith.constant 0 : index
    %c0_19 = arith.constant 0 : index
    %44 = vector.load %arg5[%c0_18, %c0_19] : memref<1x16xi32, #tpu.memory_space<vmem>>, vector<1x16xi32>
    %45 = vector.broadcast %43 : vector<16x1xi32> to vector<16x16xi32>
    %46 = vector.broadcast %44 : vector<1x16xi32> to vector<16x16xi32>
    %47 = arith.cmpi eq, %45, %46 : vector<16x16xi32>
    %48 = arith.andi %47, %34 : vector<16x16xi1>
    %c0_20 = arith.constant 0 : index
    %c0_21 = arith.constant 0 : index
    %49 = vector.load %arg9[%c0_20, %c0_21] : memref<16x1xf32, #tpu.memory_space<vmem>>, vector<16x1xf32>
    %50 = arith.extui %48 : vector<16x16xi1> to vector<16x16xi32>
    %51 = arith.sitofp %50 : vector<16x16xi32> to vector<16x16xf32>
    %cst_22 = arith.constant dense<0.000000e+00> : vector<16xf32>
    %52 = vector.multi_reduction <add>, %51, %cst_22 [1] : vector<16x16xf32> to vector<16xf32>
    %53 = vector.shape_cast %52 : vector<16xf32> to vector<16x1xf32>
    %54 = arith.addf %49, %53 : vector<16x1xf32>
    %c0_23 = arith.constant 0 : index
    %c0_24 = arith.constant 0 : index
    %55 = vector.load %arg9[%c0_23, %c0_24] : memref<16x1xf32, #tpu.memory_space<vmem>>, vector<16x1xf32>
    tpu.vector_store %arg9[%c0_23, %c0_24], %54 {strides = array<i32>} : memref<16x1xf32, #tpu.memory_space<vmem>>, vector<16x1xf32>,
    %c0_25 = arith.constant 0 : index
    %c0_26 = arith.constant 0 : index
    %56 = vector.load %arg8[%c0_25, %c0_26] : memref<16x1xf32, #tpu.memory_space<vmem>>, vector<16x1xf32>
    %cst_27 = arith.constant 0.000000e+00 : f32
    %57 = vector.broadcast %cst_27 : f32 to vector<16x16xf32>
    %58 = arith.select %48, %23, %57 : vector<16x16xi1>, vector<16x16xf32>
    %cst_28 = arith.constant dense<0.000000e+00> : vector<16xf32>
    %59 = vector.multi_reduction <add>, %58, %cst_28 [1] : vector<16x16xf32> to vector<16xf32>
    %60 = vector.shape_cast %59 : vector<16xf32> to vector<16x1xf32>
    %61 = arith.addf %56, %60 : vector<16x1xf32>
    %c0_29 = arith.constant 0 : index
    %c0_30 = arith.constant 0 : index
    %62 = vector.load %arg8[%c0_29, %c0_30] : memref<16x1xf32, #tpu.memory_space<vmem>>, vector<16x1xf32>
    tpu.vector_store %arg8[%c0_29, %c0_30], %61 {strides = array<i32>} : memref<16x1xf32, #tpu.memory_space<vmem>>, vector<16x1xf32>,
    %c0_i32_31 = arith.constant 0 : i32
    %63 = arith.cmpi eq, %arg1, %c0_i32_31 : i32
    %64 = arith.extui %63 : i1 to i32
    %c0_i32_32 = arith.constant 0 : i32
    %65 = arith.cmpi ne, %64, %c0_i32_32 : i32
    scf.if %65 {
      %c0_33 = arith.constant 0 : index
      %c0_34 = arith.constant 0 : index
      %66 = vector.load %arg9[%c0_33, %c0_34] : memref<16x1xf32, #tpu.memory_space<vmem>>, vector<16x1xf32>
      %67 = tpu.reciprocal %66 : vector<16x1xf32> -> vector<16x1xf32>
      %c0_35 = arith.constant 0 : index
      %c0_36 = arith.constant 0 : index
      %68 = vector.load %arg8[%c0_35, %c0_36] : memref<16x1xf32, #tpu.memory_space<vmem>>, vector<16x1xf32>
      %cst_37 = arith.constant 0.000000e+00 : f32
      %69 = vector.broadcast %cst_37 : f32 to vector<16x1xf32>
      %70 = arith.subf %69, %68 : vector<16x1xf32>
      %71 = arith.mulf %70, %67 : vector<16x1xf32>
      %c0_38 = arith.constant 0 : index
      %c0_39 = arith.constant 0 : index
      %72 = vector.load %arg7[%c0_38, %c0_39] : memref<16x1xf32, #tpu.memory_space<vmem>>, vector<16x1xf32>
      %73 = math.log %72 : vector<16x1xf32>
      %74 = arith.addf %71, %73 : vector<16x1xf32>
      %c0_40 = arith.constant 0 : index
      %c0_41 = arith.constant 0 : index
      %75 = vector.load %arg6[%c0_40, %c0_41] : memref<16x1xf32, #tpu.memory_space<vmem>>, vector<16x1xf32>
      tpu.vector_store %arg6[%c0_40, %c0_41], %74 {strides = array<i32>} : memref<16x1xf32, #tpu.memory_space<vmem>>, vector<16x1xf32>,
    } else {
    }
    return
  }
  func.func @transform_0(%arg0: i32, %arg1: i32) -> (i32, i32) {
    %c0_i32 = arith.constant 0 : i32
    %c0_i32_0 = arith.constant 0 : i32
    return %arg0, %c0_i32 : i32, i32
  }
  func.func @transform_1(%arg0: i32, %arg1: i32) -> (i32, i32) {
    %c0_i32 = arith.constant 0 : i32
    %c0_i32_0 = arith.constant 0 : i32
    return %arg1, %c0_i32 : i32, i32
  }
  func.func @transform_2(%arg0: i32, %arg1: i32) -> (i32, i32) {
    %c0_i32 = arith.constant 0 : i32
    %c0_i32_0 = arith.constant 0 : i32
    return %arg0, %c0_i32 : i32, i32
  }
  func.func @transform_3(%arg0: i32, %arg1: i32) -> (i32, i32) {
    %c0_i32 = arith.constant 0 : i32
    %c0_i32_0 = arith.constant 0 : i32
    return %c0_i32, %arg1 : i32, i32
  }
  func.func @transform_4(%arg0: i32, %arg1: i32) -> (i32, i32) {
    %c0_i32 = arith.constant 0 : i32
    %c0_i32_0 = arith.constant 0 : i32
    return %arg0, %c0_i32 : i32, i32
  }
}

</mosaic_0001>

<llo_original>
// kernel: tpu_custom_call.1
$region0: #{tpu_custom_call.1}
  #allocation0 [shape = 'u32[]', space=smem, size = 0x4, offset = 0x4, fixed_abs, tag = 'smem constant byte address 0x4 - core index']
  #allocation1 [shape = 'u32[72,128]{1,0:T(1,128)}', space=vmem, size = 0x9000, scoped, tag = 'internal scratch']
  #allocation2 [shape = 'f32[16,1]{1,0:T(8,128)}', space=vmem, size = 0x2000, scoped, tag = 'scratch operand']
  #allocation3 [shape = 'f32[16,1]{1,0:T(8,128)}', space=vmem, size = 0x2000, scoped, tag = 'scratch operand']
  #allocation4 [shape = 'f32[16,1]{1,0:T(8,128)}', space=vmem, size = 0x2000, scoped, tag = 'scratch operand']
  %s0 = inlined_call_operand.vmem [shape: f32[16,128], index: 0, kind: input, shape index: {}]
  %s1 = inlined_call_operand.hbm [shape: f32[16,128], index: 1, kind: input, shape index: {}]
  %s2 = inlined_call_operand.vmem [shape: s32[16,1], index: 2, kind: input, shape index: {}]
  %s3 = inlined_call_operand.vmem [shape: s32[1,16], index: 3, kind: input, shape index: {}]
  %s4 = inlined_call_operand.vmem [shape: f32[16,1], index: 4, kind: output, shape index: {}]
  %s5 = sld [smem:[#allocation0]]
  $region38: #{tpu_custom_call.1} parent=0
    _
  %s7 = ssub.s32 1, %s5
  %s8 = scalar_select 0, %s7, %s5
  $region1: #{tpu_custom_call.1} parent=0
    #allocation5 [shape = 'u8[8192]{0}', space=vmem, size = 0x2000, scoped, tag = 'input window, operand 1, single buffered']
    #allocation6 [shape = 's32[1]{0}', space=sflag, size = 0x4, scoped, tag = 'scoped memory for tpu_custom_call.1']
    %9 = vsyncpa [#allocation6], 0
    // Predicated region
    $region2: #{tpu_custom_call.1} parent=1 // pred_check
      _
    $region3: #{tpu_custom_call.1} parent=1 // pred_check_branch
      %11 = sbr.rel (0) target = $region5
    $region4: #{tpu_custom_call.1} parent=1 // pred_region
      _
    $region5: #{tpu_custom_call.1} parent=1 // pred_fallthru
      _
    // Predicated region
    $region6: #{tpu_custom_call.1} parent=1 // pred_check
      _
    $region7: #{tpu_custom_call.1} parent=1 // pred_check_branch
      %13 = sbr.rel (0) target = $region9
    $region8: #{tpu_custom_call.1} parent=1 // pred_region
      %15 = vsyncadd [#allocation6], 0
      %s16 = sshll.u32 %s1, 4
      %s17 = int_to_ptr.hbm [resolvable:$true] %s16
      %s18 = sshll.u32 [#allocation5], 4
      %s19 = int_to_ptr.vmem [resolvable:$true] %s18
      %24 = dma.hbm_to_vmem [thread:$0]  %s17, 256, %s19, [#allocation6], 128, 128, 8
    $region9: #{tpu_custom_call.1} parent=1 // pred_fallthru
      _
    // Predicated region
    $region10: #{tpu_custom_call.1} parent=1 // pred_check
      _
    $region11: #{tpu_custom_call.1} parent=1 // pred_check_branch
      %26 = sbr.rel (0) target = $region13
    $region12: #{tpu_custom_call.1} parent=1 // pred_region
      _
    $region13: #{tpu_custom_call.1} parent=1 // pred_fallthru
      _
    // Predicated region
    $region14: #{tpu_custom_call.1} parent=1 // pred_check
      _
    $region15: #{tpu_custom_call.1} parent=1 // pred_check_branch
      %28 = sbr.rel (0) target = $region17
    $region16: #{tpu_custom_call.1} parent=1 // pred_region
      _
    $region17: #{tpu_custom_call.1} parent=1 // pred_fallthru
      _
    // Predicated region
    $region18: #{tpu_custom_call.1} parent=1 // pred_check
      _
    $region19: #{tpu_custom_call.1} parent=1 // pred_check_branch
      %30 = sbr.rel (0) target = $region21
    $region20: #{tpu_custom_call.1} parent=1 // pred_region
      %32 = dma.done [#allocation6], 256
    $region21: #{tpu_custom_call.1} parent=1 // pred_fallthru
      _
    %p33 = scmp.eq.s32.totalorder 0, 0
    // Predicated region
    $region22: #{tpu_custom_call.1} parent=1 // pred_check
      %p34 = pneg %p33
    $region23: #{tpu_custom_call.1} parent=1 // pred_check_branch
      %36 = sbr.rel (%p34) target = $region25
    $region24: #{tpu_custom_call.1} parent=1 // pred_region
      %vm37 = vcmask 7168
      %38 = vst.msk [vmem:[#allocation2] sm:$0xff] %vm37, 0.0
      %39 = vst.msk [vmem:[#allocation2 + $0x8] sm:$0xff] %vm37, 0.0
      %40 = vst.msk [vmem:[#allocation3] sm:$0xff] %vm37, 0.0
      %41 = vst.msk [vmem:[#allocation3 + $0x8] sm:$0xff] %vm37, 0.0
      %42 = vst.msk [vmem:[#allocation4] sm:$0xff] %vm37, 0.0
      %43 = vst.msk [vmem:[#allocation4 + $0x8] sm:$0xff] %vm37, 0.0
    $region25: #{tpu_custom_call.1} parent=1 // pred_fallthru
      _
    %v44 = vld [vmem:[%s0] sm:$0xff]
    %v45 = vld [vmem:[%s0 + $0x8] sm:$0xff]
    %v46 = vld [vmem:[#allocation5] sm:$0xff]
    %v47 = vld [vmem:[#allocation5 + $0x8] sm:$0xff]
    %v48 = vmul.f32 %v44, %v44
    %v49 = vmul.f32 %v45, %v45
    %50 = vadd.xlane.f32.xlu0 %v48
    %v51 = vpop.xlane.xlu0 %50
    %52 = vadd.xlane.f32.xlu0 %v49
    %v53 = vpop.xlane.xlu0 %52
    %v54 = vmax.f32 %v51, 1e-16
    %v55 = vmax.f32 %v53, 1e-16
    %v56 = vrsqrt.pop %v54
    %v57 = vmul.f32 %v56, %v54
    %v58 = vmul.f32 %v57, %v56
    %v59 = vmul.f32 0.5, %v58
    %v60 = vsub.f32 1.5, %v59
    %v61 = vmul.f32 %v56, %v60
    %vm62 = vweird.f32 %v54
    %vm63 = vweird.f32 %v56
    %vm64 = vmor %vm62, %vm63
    %v65 = vsel %vm64, %v56, %v61
    %v66 = vrsqrt.pop %v55
    %v67 = vmul.f32 %v66, %v55
    %v68 = vmul.f32 %v67, %v66
    %v69 = vmul.f32 0.5, %v68
    %v70 = vsub.f32 1.5, %v69
    %v71 = vmul.f32 %v66, %v70
    %vm72 = vweird.f32 %v55
    %vm73 = vweird.f32 %v66
    %vm74 = vmor %vm72, %vm73
    %v75 = vsel %vm74, %v66, %v71
    %v76 = vmul.f32 %v44, %v65
    %v77 = vmul.f32 %v45, %v75
    %v78 = vmul.f32 %v46, %v46
    %v79 = vmul.f32 %v47, %v47
    %80 = vadd.xlane.f32.xlu0 %v78
    %v81 = vpop.xlane.xlu0 %80
    %82 = vadd.xlane.f32.xlu0 %v79
    %v83 = vpop.xlane.xlu0 %82
    %v84 = vmax.f32 %v81, 1e-16
    %v85 = vmax.f32 %v83, 1e-16
    %v86 = vrsqrt.pop %v84
    %v87 = vmul.f32 %v86, %v84
    %v88 = vmul.f32 %v87, %v86
    %v89 = vmul.f32 0.5, %v88
    %v90 = vsub.f32 1.5, %v89
    %v91 = vmul.f32 %v86, %v90
    %vm92 = vweird.f32 %v84
    %vm93 = vweird.f32 %v86
    %vm94 = vmor %vm92, %vm93
    %v95 = vsel %vm94, %v86, %v91
    %v96 = vrsqrt.pop %v85
    %v97 = vmul.f32 %v96, %v85
    %v98 = vmul.f32 %v97, %v96
    %v99 = vmul.f32 0.5, %v98
    %v100 = vsub.f32 1.5, %v99
    %v101 = vmul.f32 %v96, %v100
    %vm102 = vweird.f32 %v85
    %vm103 = vweird.f32 %v96
    %vm104 = vmor %vm102, %vm103
    %v105 = vsel %vm104, %v96, %v101
    %v106 = vmul.f32 %v46, %v95
    %v107 = vmul.f32 %v47, %v105
    %108 = vmatpush.xpose.msra.mxu0 0.0
    %109 = vmatpush.xpose.msra.mxu0 0.0
    %110 = vmatpush.xpose.msra.mxu0 0.0
    %111 = vmatpush.xpose.msra.mxu0 0.0
    %112 = vmatpush.xpose.msra.mxu0 0.0
    %113 = vmatpush.xpose.msra.mxu0 0.0
    %114 = vmatpush.xpose.msra.mxu0 0.0
    %115 = vmatpush.xpose.msra.mxu0 0.0
    %116 = vmatpush.xpose.msra.mxu0 0.0
    %117 = vmatpush.xpose.msra.mxu0 0.0
    %118 = vmatpush.xpose.msra.mxu0 0.0
    %119 = vmatpush.xpose.msra.mxu0 0.0
    %120 = vmatpush.xpose.msra.mxu0 0.0
    %121 = vmatpush.xpose.msra.mxu0 0.0
    %122 = vmatpush.xpose.msra.mxu0 %v107
    %123 = vmatpush.xpose.msra.mxu0 %v106
    %124 = vmatmul.f32.gmra.mxu0 %v76
    %v125 = vpop.f32.mrf.mxu0
    %v126 = vadd.f32 0.0, %v125
    %127 = vmatmul.f32.gmra.mxu0 %v77
    %v128 = vpop.f32.mrf.mxu0
    %v129 = vadd.f32 0.0, %v128
    %130 = vdwg.mxu0
    %v131 = vmul.f32 %v126, 2.0
    %v132 = vmul.f32 %v129, 2.0
    %s133 = smul.u32 0, 16
    %v134 = vlaneseq
    %v135 = vshrl.u32 %v134, 7
    %v136 = vadd.s32 %v135, 8
    %v137 = vstv %s133
    %v138 = vadd.s32 %v137, %v135
    %v139 = vadd.s32 %v137, %v136
    %s140 = smul.u32 0, 16
    %v141 = vlaneseq
    %v142 = vand.u32 %v141, 127
    %v143 = vstv %s140
    %v144 = vadd.s32 %v143, %v142
    %vm145 = vcmp.ne.s32.totalorder %v138, %v144
    %vm146 = vcmp.ne.s32.totalorder %v139, %v144
    %v147 = vmul.f32 %v131, 1.442695
    %v148 = vpow.pop %v147
    %v149 = vmul.f32 %v132, 1.442695
    %v150 = vpow.pop %v149
    %v151 = vsel %vm145, %v148, 0.0
    %v152 = vsel %vm146, %v150, 0.0
    %v153 = vld [vmem:[#allocation2] sm:$0xff]
    %v154 = vld [vmem:[#allocation2 + $0x8] sm:$0xff]
    %vm155 = vcmask 130048
    %v156 = vsel %vm155, %v151, 0.0
    %157 = vadd.xlane.f32.xlu0 %v156
    %v158 = vpop.xlane.xlu0 %157
    %v159 = vsel %vm155, %v152, 0.0
    %160 = vadd.xlane.f32.xlu0 %v159
    %v161 = vpop.xlane.xlu0 %160
    %v162 = vadd.f32 %v153, %v158
    %v163 = vadd.f32 %v154, %v161
    %vm164 = vcmask 7168
    %165 = vst.msk [vmem:[#allocation2] sm:$0xff] %vm164, %v162
    %166 = vst.msk [vmem:[#allocation2 + $0x8] sm:$0xff] %vm164, %v163
    %v167 = vld [vmem:[%s2] sm:$0xff]
    %v168 = vld [vmem:[%s2 + $0x8] sm:$0xff]
    %v169 = vld [vmem:[%s3] sm:$0x1]
    %170 = vset.pattern.permute.xlu0 0
    %171 = vperm.xlu0 %170, %v167
    %v172 = vpop.permute.xlu0 %171
    %173 = vset.pattern.permute.xlu0 0
    %174 = vperm.xlu0 %173, %v168
    %v175 = vpop.permute.xlu0 %174
    %v176 = vperm.slane %v169, 0
    %vm177 = vcmp.eq.s32.totalorder %v172, %v176
    %vm178 = vcmp.eq.s32.totalorder %v175, %v176
    %vm179 = vmand %vm177, %vm145
    %vm180 = vmand %vm178, %vm146
    %v181 = vld [vmem:[#allocation4] sm:$0xff]
    %v182 = vld [vmem:[#allocation4 + $0x8] sm:$0xff]
    %v183 = vsel %vm179, 1, 0
    %v184 = vsel %vm180, 1, 0
    %v185 = vcvt.s32.f32 %v183
    %v186 = vcvt.s32.f32 %v184
    %v187 = vsel %vm155, %v185, 0.0
    %188 = vadd.xlane.f32.xlu0 %v187
    %v189 = vpop.xlane.xlu0 %188
    %v190 = vsel %vm155, %v186, 0.0
    %191 = vadd.xlane.f32.xlu0 %v190
    %v192 = vpop.xlane.xlu0 %191
    %v193 = vadd.f32 %v181, %v189
    %v194 = vadd.f32 %v182, %v192
    %195 = vst.msk [vmem:[#allocation4] sm:$0xff] %vm164, %v193
    %196 = vst.msk [vmem:[#allocation4 + $0x8] sm:$0xff] %vm164, %v194
    %v197 = vld [vmem:[#allocation3] sm:$0xff]
    %v198 = vld [vmem:[#allocation3 + $0x8] sm:$0xff]
    %v199 = vsel %vm179, %v131, 0.0
    %v200 = vsel %vm180, %v132, 0.0
    %v201 = vsel %vm155, %v199, 0.0
    %202 = vadd.xlane.f32.xlu0 %v201
    %v203 = vpop.xlane.xlu0 %202
    %v204 = vsel %vm155, %v200, 0.0
    %205 = vadd.xlane.f32.xlu0 %v204
    %v206 = vpop.xlane.xlu0 %205
    %v207 = vadd.f32 %v197, %v203
    %v208 = vadd.f32 %v198, %v206
    %209 = vst.msk [vmem:[#allocation3] sm:$0xff] %vm164, %v207
    %210 = vst.msk [vmem:[#allocation3 + $0x8] sm:$0xff] %vm164, %v208
    // Predicated region
    $region26: #{tpu_custom_call.1} parent=1 // pred_check
      %p211 = pneg %p33
    $region27: #{tpu_custom_call.1} parent=1 // pred_check_branch
      %213 = sbr.rel (%p211) target = $region29
    $region28: #{tpu_custom_call.1} parent=1 // pred_region
      %v214 = vld [vmem:[#allocation4] sm:$0xff]
      %v215 = vld [vmem:[#allocation4 + $0x8] sm:$0xff]
      %v216 = vrcp.pop %v214
      %v217 = vmul.f32 %v214, %v216
      %v218 = vsub.f32 1.0, %v217
      %v219 = vmul.f32 %v216, %v218
      %v220 = vadd.f32 %v216, %v219
      %vm221 = vweird.f32 %v214
      %vm222 = vweird.f32 %v216
      %vm223 = vmor %vm221, %vm222
      %v224 = vsel %vm223, %v216, %v220
      %v225 = vand.u32 2147483647, %v214
      %vm226 = vcmp.eq.f32.partialorder %v225, 8.507059e+37
      %v227 = vand.u32 %v214, 2147483648
      %v228 = vor.u32 1.1754944e-38, %v227
      %v229 = vsel %vm226, %v228, %v224
      %v230 = vrcp.pop %v215
      %v231 = vmul.f32 %v215, %v230
      %v232 = vsub.f32 1.0, %v231
      %v233 = vmul.f32 %v230, %v232
      %v234 = vadd.f32 %v230, %v233
      %vm235 = vweird.f32 %v215
      %vm236 = vweird.f32 %v230
      %vm237 = vmor %vm235, %vm236
      %v238 = vsel %vm237, %v230, %v234
      %v239 = vand.u32 2147483647, %v215
      %vm240 = vcmp.eq.f32.partialorder %v239, 8.507059e+37
      %v241 = vand.u32 %v215, 2147483648
      %v242 = vor.u32 1.1754944e-38, %v241
      %v243 = vsel %vm240, %v242, %v238
      %v244 = vld [vmem:[#allocation3] sm:$0xff]
      %v245 = vld [vmem:[#allocation3 + $0x8] sm:$0xff]
      %v246 = vsub.f32 0.0, %v244
      %v247 = vsub.f32 0.0, %v245
      %v248 = vmul.f32 %v246, %v229
      %v249 = vmul.f32 %v247, %v243
      %v250 = vld [vmem:[#allocation2] sm:$0xff]
      %v251 = vld [vmem:[#allocation2 + $0x8] sm:$0xff]
      %v252 = vlog2.pop %v250
      %v253 = vmul.f32 %v252, 0.6931472
      %v254 = vlog2.pop %v251
      %v255 = vmul.f32 %v254, 0.6931472
      %v256 = vadd.f32 %v248, %v253
      %v257 = vadd.f32 %v249, %v255
      %258 = vst.msk [vmem:[%s4] sm:$0xff] %vm164, %v256
      %259 = vst.msk [vmem:[%s4 + $0x8] sm:$0xff] %vm164, %v257
    $region29: #{tpu_custom_call.1} parent=1 // pred_fallthru
      _
    // Predicated region
    $region30: #{tpu_custom_call.1} parent=1 // pred_check
      _
    $region31: #{tpu_custom_call.1} parent=1 // pred_check_branch
      %261 = sbr.rel (0) target = $region33
    $region32: #{tpu_custom_call.1} parent=1 // pred_region
      _
    $region33: #{tpu_custom_call.1} parent=1 // pred_fallthru
      _
    // Predicated region
    $region34: #{tpu_custom_call.1} parent=1 // pred_check
      _
    $region35: #{tpu_custom_call.1} parent=1 // pred_check_branch
      %263 = sbr.rel (0) target = $region37
    $region36: #{tpu_custom_call.1} parent=1 // pred_region
      _
    $region37: #{tpu_custom_call.1} parent=1 // pred_fallthru
      _
    %264 = vsyncpa [#allocation6], 1

</llo_original>
